<compile_context>
chip_gen: v5e
topology: v5e:2x2
jax: 0.10.0
libtpu: 0.0.40
codegen_flags: <defaults>
</compile_context>

<pallas_src>
import jax
import jax.numpy as jnp
from jax.experimental import pallas as pl
from jax.experimental.pallas import tpu as pltpu


def _round_up(n, m):
    return ((n + m - 1) // m) * m


def mlp_kernel(x_ref, w1_ref, b1_ref, w2_ref, b2_ref, w3_ref, b3_ref, o_ref):
    # x streamed as f32; cast to bf16 in-kernel (no extra HBM pass in wrapper).
    x = x_ref[...].astype(jnp.bfloat16)
    # Layer 1 (block-diagonal folded): (rows, f*D) @ (f*D, f*64)
    h1 = jnp.dot(x, w1_ref[...], preferred_element_type=jnp.float32)
    h1 = jnp.maximum(h1 + b1_ref[...], 0.0)
    # Layer 2: (rows, f*64) @ (f*64, f*32)
    h2 = jnp.dot(h1.astype(jnp.bfloat16), w2_ref[...],
                 preferred_element_type=jnp.float32)
    h2 = jnp.maximum(h2 + b2_ref[...], 0.0)
    # Layer 3: (rows, f*32) @ (f*32, f)  -- standard matmul, no transpose/M=1.
    out = jnp.dot(h2.astype(jnp.bfloat16), w3_ref[...],
                  preferred_element_type=jnp.float32)
    o_ref[...] = (out + b3_ref[0, 0]).astype(o_ref.dtype)


def my_model_forward(x, params, *, tile_b=8192):
    """x: (B, input_dim) float32. Returns (B,) float32 (matches squeeze(1))."""
    w1, b1, w2, b2, w3, b3 = params
    B, D = x.shape

    # Row-folding factor: pack f rows into the 128-lane dim.  Capped at 8 so
    # the block-diagonal weight footprint (~f^2) stays tiny.
    if D <= 128 and 128 % D == 0:
        f = min(128 // D, 8)
    else:
        f = 1  # TODO(synk): generic-D folding (pad D up to a divisor of 128)

    align = max(128, 8 * f)          # tile_rows multiple of 8, lane-friendly
    tile_b = _round_up(min(tile_b, _round_up(B, align)), align)
    b_pad = _round_up(B, tile_b)
    if b_pad != B:
        # Pad only when the batch is ragged; zero rows are harmless (ReLU of a
        # finite bias) and are sliced off below.
        x = jnp.pad(x, ((0, b_pad - B), (0, 0)))

    # Fold f rows into the lane dim (row-major reshape -> contiguous, free).
    xf = x.reshape(b_pad // f, f * D)

    # Block-diagonal folded weights.  Tiny (<1 MiB), built once per call and
    # VMEM-resident across the whole grid via constant index_maps.  bf16 keeps
    # the MXU on its fast path; biases / accumulation stay f32.
    eye = jnp.eye(f, dtype=jnp.float32)
    w1_bd = jnp.kron(eye, w1).astype(jnp.bfloat16)   # (f*D,  f*64)
    b1_bd = jnp.tile(b1, (1, f))                     # (1,    f*64)
    w2_bd = jnp.kron(eye, w2).astype(jnp.bfloat16)   # (f*64, f*32)
    b2_bd = jnp.tile(b2, (1, f))                     # (1,    f*32)
    w3_bd = jnp.kron(eye, w3).astype(jnp.bfloat16)   # (f*32, f)

    tile_rows = tile_b // f
    num_tiles = b_pad // tile_b

    def const_spec(shape):
        # Same block every grid step -> stays VMEM-resident (no re-DMA).
        return pl.BlockSpec(shape, lambda i: (0, 0))

    out = pl.pallas_call(
        mlp_kernel,
        out_shape=jax.ShapeDtypeStruct((b_pad // f, f), jnp.float32),
        grid=(num_tiles,),
        in_specs=[
            pl.BlockSpec((tile_rows, f * D), lambda i: (i, 0)),  # x: streamed f32
            const_spec(w1_bd.shape),
            const_spec(b1_bd.shape),
            const_spec(w2_bd.shape),
            const_spec(b2_bd.shape),
            const_spec(w3_bd.shape),
            pl.BlockSpec(memory_space=pltpu.MemorySpace.SMEM),   # b3 scalar
        ],
        out_specs=pl.BlockSpec((tile_rows, f), lambda i: (i, 0)),
        compiler_params=pltpu.CompilerParams(
            dimension_semantics=("parallel",)),
    )(xf, w1_bd, b1_bd, w2_bd, b2_bd, w3_bd, b3)

    # Unfold + squeeze(1) + drop batch padding — pure glue, stays in plain JAX.
    return out.reshape(b_pad)[:B]


def init_params(key, input_dim):
    """PyTorch-style uniform(-1/sqrt(fan_in), 1/sqrt(fan_in)) init.

    Weights are stored (in, out) so the kernel computes x @ W.
    """
    def uniform(k, shape, fan_in):
        bound = 1.0 / jnp.sqrt(fan_in)
        return jax.random.uniform(k, shape, jnp.float32, -bound, bound)

    k = jax.random.split(key, 6)
    w1 = uniform(k[0], (input_dim, 64), input_dim)
    b1 = uniform(k[1], (1, 64), input_dim)
    w2 = uniform(k[2], (64, 32), 64)
    b2 = uniform(k[3], (1, 32), 64)
    w3 = uniform(k[4], (32, 1), 32)
    b3 = uniform(k[5], (1, 1), 32)
    return (w1, b1, w2, b2, w3, b3)


def reference_forward(x, params):
    w1, b1, w2, b2, w3, b3 = params
    h1 = jnp.maximum(x @ w1 + b1, 0.0)
    h2 = jnp.maximum(h1 @ w2 + b2, 0.0)
    return (h2 @ w3 + b3)[:, 0]


if __name__ == "__main__":
    key = jax.random.PRNGKey(0)
    kx, kp, kx2 = jax.random.split(key, 3)

    input_dim = 32
    params = init_params(kp, input_dim)

    # Small deployed shape (B=8): single tile, padded ragged tail.
    x_small = jax.random.normal(kx, (8, input_dim), jnp.float32)
    y_small = jax.block_until_ready(my_model_forward(x_small, params))
    y_small_ref = reference_forward(x_small, params)
    assert y_small.shape == (8,), y_small.shape
    # bf16 MXU path => loosened tolerance vs the f32 reference.
    assert jnp.allclose(y_small, y_small_ref, atol=2e-2, rtol=2e-2), (y_small, y_small_ref)

    # Ragged batch with multiple grid steps: exercises weight residency,
    # double-buffered x streaming, row folding and the padded tail.
    # (tile_b=256 here only to force >1 grid step at this tiny test size;
    #  the production default stays tile_b=8192.)
    x_big = jax.random.normal(kx2, (300, input_dim), jnp.float32)
    y_big = jax.block_until_ready(my_model_forward(x_big, params, tile_b=256))
    y_big_ref = reference_forward(x_big, params)
    assert y_big.shape == (300,), y_big.shape
    assert jnp.allclose(y_big, y_big_ref, atol=2e-2, rtol=2e-2), (y_big, y_big_ref)

    print("KERNEL_OK")
</pallas_src>

<mosaic_0001>
module attributes {stable_mosaic.version = 11 : i64} {
  func.func @mlp_kernel(%arg0: i32, %arg1: memref<32x128xf32, #tpu.memory_space<vmem>>, %arg2: memref<128x256xbf16, #tpu.memory_space<vmem>>, %arg3: memref<1x256xf32, #tpu.memory_space<vmem>>, %arg4: memref<256x128xbf16, #tpu.memory_space<vmem>>, %arg5: memref<1x128xf32, #tpu.memory_space<vmem>>, %arg6: memref<128x4xbf16, #tpu.memory_space<vmem>>, %arg7: memref<1x1xf32, #tpu.memory_space<smem>>, %arg8: memref<32x4xf32, #tpu.memory_space<vmem>>) attributes {dimension_semantics = [#tpu.dimension_semantics<parallel>], iteration_bounds = array<i64: 1>, scalar_prefetch = 0 : i64, scratch_operands = 0 : i64, tpu.core_type = #tpu.core_type<tc>, window_params = [{transform_indices = @transform_0, window_bounds = array<i64: 32, 128>}, {pipeline_mode = #tpu.pipeline_mode<synchronous>, transform_indices = @transform_1, window_bounds = array<i64: 128, 256>}, {pipeline_mode = #tpu.pipeline_mode<synchronous>, transform_indices = @transform_2, window_bounds = array<i64: 1, 256>}, {pipeline_mode = #tpu.pipeline_mode<synchronous>, transform_indices = @transform_3, window_bounds = array<i64: 256, 128>}, {pipeline_mode = #tpu.pipeline_mode<synchronous>, transform_indices = @transform_4, window_bounds = array<i64: 1, 128>}, {pipeline_mode = #tpu.pipeline_mode<synchronous>, transform_indices = @transform_5, window_bounds = array<i64: 128, 4>}, {transform_indices = @transform_6, window_bounds = array<i64: 1, 1>}, {transform_indices = @transform_7, window_bounds = array<i64: 32, 4>}]} {
    %c0 = arith.constant 0 : index
    %c0_0 = arith.constant 0 : index
    %0 = vector.load %arg1[%c0, %c0_0] : memref<32x128xf32, #tpu.memory_space<vmem>>, vector<32x128xf32>
    %1 = arith.truncf %0 : vector<32x128xf32> to vector<32x128xbf16>
    %c0_1 = arith.constant 0 : index
    %c0_2 = arith.constant 0 : index
    %2 = vector.load %arg2[%c0_1, %c0_2] : memref<128x256xbf16, #tpu.memory_space<vmem>>, vector<128x256xbf16>
    %cst = arith.constant dense<0.000000e+00> : vector<32x256xf32>
    %3 = tpu.matmul %1, %2, %cst {dimension_numbers = #tpu.dot_dimension_numbers<[1], [0], [0], [1], [0, 0, 1, 1], [], []>} : vector<32x128xbf16>, vector<128x256xbf16>, vector<32x256xf32> -> vector<32x256xf32>
    %c0_3 = arith.constant 0 : index
    %c0_4 = arith.constant 0 : index
    %4 = vector.load %arg3[%c0_3, %c0_4] : memref<1x256xf32, #tpu.memory_space<vmem>>, vector<1x256xf32>
    %5 = vector.broadcast %4 : vector<1x256xf32> to vector<32x256xf32>
    %6 = arith.addf %3, %5 : vector<32x256xf32>
    %cst_5 = arith.constant 0.000000e+00 : f32
    %7 = vector.broadcast %cst_5 : f32 to vector<32x256xf32>
    %8 = arith.maximumf %6, %7 : vector<32x256xf32>
    %9 = arith.truncf %8 : vector<32x256xf32> to vector<32x256xbf16>
    %c0_6 = arith.constant 0 : index
    %c0_7 = arith.constant 0 : index
    %10 = vector.load %arg4[%c0_6, %c0_7] : memref<256x128xbf16, #tpu.memory_space<vmem>>, vector<256x128xbf16>
    %cst_8 = arith.constant dense<0.000000e+00> : vector<32x128xf32>
    %11 = tpu.matmul %9, %10, %cst_8 {dimension_numbers = #tpu.dot_dimension_numbers<[1], [0], [0], [1], [0, 0, 1, 1], [], []>} : vector<32x256xbf16>, vector<256x128xbf16>, vector<32x128xf32> -> vector<32x128xf32>
    %c0_9 = arith.constant 0 : index
    %c0_10 = arith.constant 0 : index
    %12 = vector.load %arg5[%c0_9, %c0_10] : memref<1x128xf32, #tpu.memory_space<vmem>>, vector<1x128xf32>
    %13 = vector.broadcast %12 : vector<1x128xf32> to vector<32x128xf32>
    %14 = arith.addf %11, %13 : vector<32x128xf32>
    %cst_11 = arith.constant 0.000000e+00 : f32
    %15 = vector.broadcast %cst_11 : f32 to vector<32x128xf32>
    %16 = arith.maximumf %14, %15 : vector<32x128xf32>
    %17 = arith.truncf %16 : vector<32x128xf32> to vector<32x128xbf16>
    %c0_12 = arith.constant 0 : index
    %c0_13 = arith.constant 0 : index
    %18 = vector.load %arg6[%c0_12, %c0_13] : memref<128x4xbf16, #tpu.memory_space<vmem>>, vector<128x4xbf16>
    %cst_14 = arith.constant dense<0.000000e+00> : vector<32x4xf32>
    %19 = tpu.matmul %17, %18, %cst_14 {dimension_numbers = #tpu.dot_dimension_numbers<[1], [0], [0], [1], [0, 0, 1, 1], [], []>} : vector<32x128xbf16>, vector<128x4xbf16>, vector<32x4xf32> -> vector<32x4xf32>
    %c0_15 = arith.constant 0 : index
    %c0_16 = arith.constant 0 : index
    %20 = memref.load %arg7[%c0_15, %c0_16] : memref<1x1xf32, #tpu.memory_space<smem>>
    %21 = vector.broadcast %20 : f32 to vector<32x4xf32>
    %22 = arith.addf %19, %21 : vector<32x4xf32>
    %c0_17 = arith.constant 0 : index
    %c0_18 = arith.constant 0 : index
    %23 = vector.load %arg8[%c0_17, %c0_18] : memref<32x4xf32, #tpu.memory_space<vmem>>, vector<32x4xf32>
    tpu.vector_store %arg8[%c0_17, %c0_18], %22 {strides = array<i32>} : memref<32x4xf32, #tpu.memory_space<vmem>>, vector<32x4xf32>,
    return
  }
  func.func @transform_0(%arg0: i32) -> (i32, i32) {
    %c0_i32 = arith.constant 0 : i32
    %c0_i32_0 = arith.constant 0 : i32
    return %arg0, %c0_i32 : i32, i32
  }
  func.func @transform_1(%arg0: i32) -> (i32, i32) {
    %c0_i32 = arith.constant 0 : i32
    %c0_i32_0 = arith.constant 0 : i32
    %c0_i32_1 = arith.constant 0 : i32
    return %c0_i32, %c0_i32_0 : i32, i32
  }
  func.func @transform_2(%arg0: i32) -> (i32, i32) {
    %c0_i32 = arith.constant 0 : i32
    %c0_i32_0 = arith.constant 0 : i32
    %c0_i32_1 = arith.constant 0 : i32
    return %c0_i32, %c0_i32_0 : i32, i32
  }
  func.func @transform_3(%arg0: i32) -> (i32, i32) {
    %c0_i32 = arith.constant 0 : i32
    %c0_i32_0 = arith.constant 0 : i32
    %c0_i32_1 = arith.constant 0 : i32
    return %c0_i32, %c0_i32_0 : i32, i32
  }
  func.func @transform_4(%arg0: i32) -> (i32, i32) {
    %c0_i32 = arith.constant 0 : i32
    %c0_i32_0 = arith.constant 0 : i32
    %c0_i32_1 = arith.constant 0 : i32
    return %c0_i32, %c0_i32_0 : i32, i32
  }
  func.func @transform_5(%arg0: i32) -> (i32, i32) {
    %c0_i32 = arith.constant 0 : i32
    %c0_i32_0 = arith.constant 0 : i32
    %c0_i32_1 = arith.constant 0 : i32
    return %c0_i32, %c0_i32_0 : i32, i32
  }
  func.func @transform_6(%arg0: i32) -> (i32, i32) {
    %c0_i32 = arith.constant 0 : i32
    %c0_i32_0 = arith.constant 0 : i32
    %c0_i32_1 = arith.constant 0 : i32
    return %c0_i32, %c0_i32_0 : i32, i32
  }
  func.func @transform_7(%arg0: i32) -> (i32, i32) {
    %c0_i32 = arith.constant 0 : i32
    %c0_i32_0 = arith.constant 0 : i32
    return %arg0, %c0_i32 : i32, i32
  }
}

</mosaic_0001>

<llo_original>
// kernel: tpu_custom_call.1
$region0: #{tpu_custom_call.1}
  #allocation0 [shape = 'u32[]', space=smem, size = 0x4, offset = 0x4, fixed_abs, tag = 'smem constant byte address 0x4 - core index']
  #allocation1 [shape = 'u32[72,128]{1,0:T(1,128)}', space=vmem, size = 0x9000, scoped, tag = 'internal scratch']
  #allocation2 [shape = 'f32[1,1]{1,0:T(1,128)S(6)}', space=smem, size = 0x200, scoped, tag = 'scoped memory for tpu_custom_call.1']
  %s0 = inlined_call_operand.vmem [shape: f32[32,128], index: 0, kind: input, shape index: {}]
  %s1 = inlined_call_operand.hbm [shape: bf16[128,256], index: 1, kind: input, shape index: {}]
  %s2 = inlined_call_operand.vmem [shape: f32[1,256], index: 2, kind: input, shape index: {}]
  %s3 = inlined_call_operand.hbm [shape: bf16[256,128], index: 3, kind: input, shape index: {}]
  %s4 = inlined_call_operand.vmem [shape: f32[1,128], index: 4, kind: input, shape index: {}]
  %s5 = inlined_call_operand.vmem [shape: bf16[128,4], index: 5, kind: input, shape index: {}]
  %s6 = inlined_call_operand.<no memory space> [shape: f32[1,1], index: 6, kind: input, shape index: {}]
  %s7 = inlined_call_operand.vmem [shape: f32[32,4], index: 7, kind: output, shape index: {}]
  %s8 = sld [smem:[#allocation0]]
  $region46: #{tpu_custom_call.1} parent=0
    _
  %s10 = ssub.s32 1, %s8
  %s11 = scalar_select 0, %s10, %s8
  %12 = sst [smem:[#allocation2]] %s6
  $region1: #{tpu_custom_call.1} parent=0
    #allocation3 [shape = 'u8[65536]{0}', space=vmem, size = 0x10000, scoped, tag = 'input window, operand 1, single buffered']
    #allocation4 [shape = 's32[1]{0}', space=sflag, size = 0x4, scoped, tag = 'scoped memory for tpu_custom_call.1']
    #allocation5 [shape = 'u8[65536]{0}', space=vmem, size = 0x10000, scoped, tag = 'input window, operand 3, single buffered']
    #allocation6 [shape = 's32[1]{0}', space=sflag, size = 0x4, scoped, tag = 'scoped memory for tpu_custom_call.1']
    %13 = vsyncpa [#allocation4], 0
    %14 = vsyncpa [#allocation6], 0
    // Predicated region
    $region2: #{tpu_custom_call.1} parent=1 // pred_check
      _
    $region3: #{tpu_custom_call.1} parent=1 // pred_check_branch
      %16 = sbr.rel (0) target = $region5
    $region4: #{tpu_custom_call.1} parent=1 // pred_region
      _
    $region5: #{tpu_custom_call.1} parent=1 // pred_fallthru
      _
    // Predicated region
    $region6: #{tpu_custom_call.1} parent=1 // pred_check
      _
    $region7: #{tpu_custom_call.1} parent=1 // pred_check_branch
      %18 = sbr.rel (0) target = $region9
    $region8: #{tpu_custom_call.1} parent=1 // pred_region
      %20 = vsyncadd [#allocation4], 0
      %s21 = sshll.u32 %s1, 4
      %s22 = int_to_ptr.hbm [resolvable:$true] %s21
      %s23 = sshll.u32 [#allocation3], 4
      %s24 = int_to_ptr.vmem [resolvable:$true] %s23
      %29 = dma.hbm_to_vmem [thread:$0]  %s22, 2048, %s24, [#allocation4], 128, 128, 8
    $region9: #{tpu_custom_call.1} parent=1 // pred_fallthru
      _
    // Predicated region
    $region10: #{tpu_custom_call.1} parent=1 // pred_check
      _
    $region11: #{tpu_custom_call.1} parent=1 // pred_check_branch
      %31 = sbr.rel (0) target = $region13
    $region12: #{tpu_custom_call.1} parent=1 // pred_region
      _
    $region13: #{tpu_custom_call.1} parent=1 // pred_fallthru
      _
    // Predicated region
    $region14: #{tpu_custom_call.1} parent=1 // pred_check
      _
    $region15: #{tpu_custom_call.1} parent=1 // pred_check_branch
      %33 = sbr.rel (0) target = $region17
    $region16: #{tpu_custom_call.1} parent=1 // pred_region
      %35 = vsyncadd [#allocation6], 0
      %s36 = sshll.u32 %s3, 4
      %s37 = int_to_ptr.hbm [resolvable:$true] %s36
      %s38 = sshll.u32 [#allocation5], 4
      %s39 = int_to_ptr.vmem [resolvable:$true] %s38
      %44 = dma.hbm_to_vmem [thread:$0]  %s37, 2048, %s39, [#allocation6], 64, 64, 4
    $region17: #{tpu_custom_call.1} parent=1 // pred_fallthru
      _
    // Predicated region
    $region18: #{tpu_custom_call.1} parent=1 // pred_check
      _
    $region19: #{tpu_custom_call.1} parent=1 // pred_check_branch
      %46 = sbr.rel (0) target = $region21
    $region20: #{tpu_custom_call.1} parent=1 // pred_region
      _
    $region21: #{tpu_custom_call.1} parent=1 // pred_fallthru
      _
    // Predicated region
    $region22: #{tpu_custom_call.1} parent=1 // pred_check
      _
    $region23: #{tpu_custom_call.1} parent=1 // pred_check_branch
      %48 = sbr.rel (0) target = $region25
    $region24: #{tpu_custom_call.1} parent=1 // pred_region
      _
    $region25: #{tpu_custom_call.1} parent=1 // pred_fallthru
      _
    // Predicated region
    $region26: #{tpu_custom_call.1} parent=1 // pred_check
      _
    $region27: #{tpu_custom_call.1} parent=1 // pred_check_branch
      %50 = sbr.rel (0) target = $region29
    $region28: #{tpu_custom_call.1} parent=1 // pred_region
      _
    $region29: #{tpu_custom_call.1} parent=1 // pred_fallthru
      _
    // Predicated region
    $region30: #{tpu_custom_call.1} parent=1 // pred_check
      _
    $region31: #{tpu_custom_call.1} parent=1 // pred_check_branch
      %52 = sbr.rel (0) target = $region33
    $region32: #{tpu_custom_call.1} parent=1 // pred_region
      %54 = dma.done [#allocation4], 2048
    $region33: #{tpu_custom_call.1} parent=1 // pred_fallthru
      _
    // Predicated region
    $region34: #{tpu_custom_call.1} parent=1 // pred_check
      _
    $region35: #{tpu_custom_call.1} parent=1 // pred_check_branch
      %56 = sbr.rel (0) target = $region37
    $region36: #{tpu_custom_call.1} parent=1 // pred_region
      %58 = dma.done [#allocation6], 2048
    $region37: #{tpu_custom_call.1} parent=1 // pred_fallthru
      _
    %v59 = vld [vmem:[%s0] sm:$0xff]
    %v60 = vld [vmem:[%s0 + $0x8] sm:$0xff]
    %v61 = vld [vmem:[%s0 + $0x10] sm:$0xff]
    %v62 = vld [vmem:[%s0 + $0x18] sm:$0xff]
    %v63 = vpack.c.bf16 %v60, %v59
    %v64 = vpack.c.bf16 %v62, %v61
    %v65 = vld [vmem:[#allocation3] sm:$0xff]
    %v66 = vld [vmem:[#allocation3 + $0x8] sm:$0xff]
    %v67 = vld [vmem:[#allocation3 + $0x10] sm:$0xff]
    %v68 = vld [vmem:[#allocation3 + $0x18] sm:$0xff]
    %v69 = vld [vmem:[#allocation3 + $0x20] sm:$0xff]
    %v70 = vld [vmem:[#allocation3 + $0x28] sm:$0xff]
    %v71 = vld [vmem:[#allocation3 + $0x30] sm:$0xff]
    %v72 = vld [vmem:[#allocation3 + $0x38] sm:$0xff]
    %v73 = vld [vmem:[#allocation3 + $0x40] sm:$0xff]
    %v74 = vld [vmem:[#allocation3 + $0x48] sm:$0xff]
    %v75 = vld [vmem:[#allocation3 + $0x50] sm:$0xff]
    %v76 = vld [vmem:[#allocation3 + $0x58] sm:$0xff]
    %v77 = vld [vmem:[#allocation3 + $0x60] sm:$0xff]
    %v78 = vld [vmem:[#allocation3 + $0x68] sm:$0xff]
    %v79 = vld [vmem:[#allocation3 + $0x70] sm:$0xff]
    %v80 = vld [vmem:[#allocation3 + $0x78] sm:$0xff]
    %v81 = vld [vmem:[%s2] sm:$0x3]
    %v83 = vperm.slane %v81, 0
    %v84 = vperm.slane %v81, 1
    %v103 = vunpack.c.l.b16 %v65
    %v104 = vunpack.c.h.b16 %v65
    %v105 = vunpack.c.l.b16 %v66
    %v106 = vunpack.c.h.b16 %v66
    %v107 = vunpack.c.l.b16 %v67
    %v108 = vunpack.c.h.b16 %v67
    %v109 = vunpack.c.l.b16 %v68
    %v110 = vunpack.c.h.b16 %v68
    %v111 = vunpack.c.l.b16 %v69
    %v112 = vunpack.c.h.b16 %v69
    %v113 = vunpack.c.l.b16 %v70
    %v114 = vunpack.c.h.b16 %v70
    %v115 = vunpack.c.l.b16 %v71
    %v116 = vunpack.c.h.b16 %v71
    %v117 = vunpack.c.l.b16 %v72
    %v118 = vunpack.c.h.b16 %v72
    %v119 = vunpack.c.l.b16 %v73
    %v120 = vunpack.c.h.b16 %v73
    %v121 = vunpack.c.l.b16 %v74
    %v122 = vunpack.c.h.b16 %v74
    %v123 = vunpack.c.l.b16 %v75
    %v124 = vunpack.c.h.b16 %v75
    %v125 = vunpack.c.l.b16 %v76
    %v126 = vunpack.c.h.b16 %v76
    %v127 = vunpack.c.l.b16 %v77
    %v128 = vunpack.c.h.b16 %v77
    %v129 = vunpack.c.l.b16 %v78
    %v130 = vunpack.c.h.b16 %v78
    %v131 = vunpack.c.l.b16 %v79
    %v132 = vunpack.c.h.b16 %v79
    %v133 = vunpack.c.l.b16 %v80
    %v134 = vunpack.c.h.b16 %v80
    %v135 = vpack.c.b16 %v105, %v103
    %v136 = vpack.c.b16 %v106, %v104
    %v137 = vpack.c.b16 %v109, %v107
    %v138 = vpack.c.b16 %v110, %v108
    %v139 = vpack.c.b16 %v113, %v111
    %v140 = vpack.c.b16 %v114, %v112
    %v141 = vpack.c.b16 %v117, %v115
    %v142 = vpack.c.b16 %v118, %v116
    %v143 = vpack.c.b16 %v121, %v119
    %v144 = vpack.c.b16 %v122, %v120
    %v145 = vpack.c.b16 %v125, %v123
    %v146 = vpack.c.b16 %v126, %v124
    %v147 = vpack.c.b16 %v129, %v127
    %v148 = vpack.c.b16 %v130, %v128
    %v149 = vpack.c.b16 %v133, %v131
    %v150 = vpack.c.b16 %v134, %v132
    %167 = vmatpush.bf16.msra.mxu0 %v149
    %168 = vmatpush.bf16.msra.mxu0 %v147
    %169 = vmatpush.bf16.msra.mxu0 %v145
    %170 = vmatpush.bf16.msra.mxu0 %v143
    %171 = vmatpush.bf16.msra.mxu0 %v141
    %172 = vmatpush.bf16.msra.mxu0 %v139
    %173 = vmatpush.bf16.msra.mxu0 %v137
    %174 = vmatpush.bf16.msra.mxu0 %v135
    %175 = vmatmul.bf16.gmra.mxu0 %v63
    %v176 = vpop.f32.mrf.mxu0
    %v177 = vadd.f32 %v83, %v176
    %v178 = vpop.f32.mrf.mxu0
    %v179 = vadd.f32 %v83, %v178
    %180 = vmatmul.bf16.gmra.mxu0 %v64
    %v181 = vpop.f32.mrf.mxu0
    %v182 = vadd.f32 %v83, %v181
    %v183 = vpop.f32.mrf.mxu0
    %v184 = vadd.f32 %v83, %v183
    %185 = vdwg.mxu0
    %186 = vmatpush.bf16.msra.mxu0 %v150
    %187 = vmatpush.bf16.msra.mxu0 %v148
    %188 = vmatpush.bf16.msra.mxu0 %v146
    %189 = vmatpush.bf16.msra.mxu0 %v144
    %190 = vmatpush.bf16.msra.mxu0 %v142
    %191 = vmatpush.bf16.msra.mxu0 %v140
    %192 = vmatpush.bf16.msra.mxu0 %v138
    %193 = vmatpush.bf16.msra.mxu0 %v136
    %194 = vmatmul.bf16.gmra.mxu0 %v63
    %v195 = vpop.f32.mrf.mxu0
    %v196 = vadd.f32 %v84, %v195
    %v197 = vpop.f32.mrf.mxu0
    %v198 = vadd.f32 %v84, %v197
    %199 = vmatmul.bf16.gmra.mxu0 %v64
    %v200 = vpop.f32.mrf.mxu0
    %v201 = vadd.f32 %v84, %v200
    %v202 = vpop.f32.mrf.mxu0
    %v203 = vadd.f32 %v84, %v202
    %204 = vdwg.mxu0
    %v205 = vmax.f32 %v177, 0.0
    %v206 = vmax.f32 %v196, 0.0
    %v207 = vmax.f32 %v179, 0.0
    %v208 = vmax.f32 %v198, 0.0
    %v209 = vmax.f32 %v182, 0.0
    %v210 = vmax.f32 %v201, 0.0
    %v211 = vmax.f32 %v184, 0.0
    %v212 = vmax.f32 %v203, 0.0
    %v213 = vpack.c.bf16 %v207, %v205
    %v214 = vpack.c.bf16 %v208, %v206
    %v215 = vpack.c.bf16 %v211, %v209
    %v216 = vpack.c.bf16 %v212, %v210
    %v217 = vld [vmem:[#allocation5] sm:$0xf]
    %v218 = vld [vmem:[#allocation5 + $0x4] sm:$0xf]
    %v219 = vld [vmem:[#allocation5 + $0x8] sm:$0xf]
    %v220 = vld [vmem:[#allocation5 + $0xc] sm:$0xf]
    %v221 = vld [vmem:[#allocation5 + $0x10] sm:$0xf]
    %v222 = vld [vmem:[#allocation5 + $0x14] sm:$0xf]
    %v223 = vld [vmem:[#allocation5 + $0x18] sm:$0xf]
    %v224 = vld [vmem:[#allocation5 + $0x1c] sm:$0xf]
    %v225 = vld [vmem:[#allocation5 + $0x20] sm:$0xf]
    %v226 = vld [vmem:[#allocation5 + $0x24] sm:$0xf]
    %v227 = vld [vmem:[#allocation5 + $0x28] sm:$0xf]
    %v228 = vld [vmem:[#allocation5 + $0x2c] sm:$0xf]
    %v229 = vld [vmem:[#allocation5 + $0x30] sm:$0xf]
    %v230 = vld [vmem:[#allocation5 + $0x34] sm:$0xf]
    %v231 = vld [vmem:[#allocation5 + $0x38] sm:$0xf]
    %v232 = vld [vmem:[#allocation5 + $0x3c] sm:$0xf]
    %v233 = vld [vmem:[#allocation5 + $0x40] sm:$0xf]
    %v234 = vld [vmem:[#allocation5 + $0x44] sm:$0xf]
    %v235 = vld [vmem:[#allocation5 + $0x48] sm:$0xf]
    %v236 = vld [vmem:[#allocation5 + $0x4c] sm:$0xf]
    %v237 = vld [vmem:[#allocation5 + $0x50] sm:$0xf]
    %v238 = vld [vmem:[#allocation5 + $0x54] sm:$0xf]
    %v239 = vld [vmem:[#allocation5 + $0x58] sm:$0xf]
    %v240 = vld [vmem:[#allocation5 + $0x5c] sm:$0xf]
    %v241 = vld [vmem:[#allocation5 + $0x60] sm:$0xf]
    %v242 = vld [vmem:[#allocation5 + $0x64] sm:$0xf]
    %v243 = vld [vmem:[#allocation5 + $0x68] sm:$0xf]
    %v244 = vld [vmem:[#allocation5 + $0x6c] sm:$0xf]
    %v245 = vld [vmem:[#allocation5 + $0x70] sm:$0xf]
    %v246 = vld [vmem:[#allocation5 + $0x74] sm:$0xf]
    %v247 = vld [vmem:[#allocation5 + $0x78] sm:$0xf]
    %v248 = vld [vmem:[#allocation5 + $0x7c] sm:$0xf]
    %v249 = vld [vmem:[%s4] sm:$0x1]
    %v251 = vperm.slane %v249, 0
    %v285 = vunpack.c.l.b16 %v217
    %v286 = vunpack.c.l.b16 %v218
    %v287 = vunpack.c.l.b16 %v219
    %v288 = vunpack.c.l.b16 %v220
    %v289 = vunpack.c.l.b16 %v221
    %v290 = vunpack.c.l.b16 %v222
    %v291 = vunpack.c.l.b16 %v223
    %v292 = vunpack.c.l.b16 %v224
    %v293 = vunpack.c.l.b16 %v225
    %v294 = vunpack.c.l.b16 %v226
    %v295 = vunpack.c.l.b16 %v227
    %v296 = vunpack.c.l.b16 %v228
    %v297 = vunpack.c.l.b16 %v229
    %v298 = vunpack.c.l.b16 %v230
    %v299 = vunpack.c.l.b16 %v231
    %v300 = vunpack.c.l.b16 %v232
    %v301 = vunpack.c.l.b16 %v233
    %v302 = vunpack.c.l.b16 %v234
    %v303 = vunpack.c.l.b16 %v235
    %v304 = vunpack.c.l.b16 %v236
    %v305 = vunpack.c.l.b16 %v237
    %v306 = vunpack.c.l.b16 %v238
    %v307 = vunpack.c.l.b16 %v239
    %v308 = vunpack.c.l.b16 %v240
    %v309 = vunpack.c.l.b16 %v241
    %v310 = vunpack.c.l.b16 %v242
    %v311 = vunpack.c.l.b16 %v243
    %v312 = vunpack.c.l.b16 %v244
    %v313 = vunpack.c.l.b16 %v245
    %v314 = vunpack.c.l.b16 %v246
    %v315 = vunpack.c.l.b16 %v247
    %v316 = vunpack.c.l.b16 %v248
    %v317 = vpack.c.b16 %v286, %v285
    %v318 = vpack.c.b16 %v288, %v287
    %v319 = vpack.c.b16 %v290, %v289
    %v320 = vpack.c.b16 %v292, %v291
    %v321 = vpack.c.b16 %v294, %v293
    %v322 = vpack.c.b16 %v296, %v295
    %v323 = vpack.c.b16 %v298, %v297
    %v324 = vpack.c.b16 %v300, %v299
    %v325 = vpack.c.b16 %v302, %v301
    %v326 = vpack.c.b16 %v304, %v303
    %v327 = vpack.c.b16 %v306, %v305
    %v328 = vpack.c.b16 %v308, %v307
    %v329 = vpack.c.b16 %v310, %v309
    %v330 = vpack.c.b16 %v312, %v311
    %v331 = vpack.c.b16 %v314, %v313
    %v332 = vpack.c.b16 %v316, %v315
    %349 = vmatpush.bf16.msra.mxu0 %v324
    %350 = vmatpush.bf16.msra.mxu0 %v323
    %351 = vmatpush.bf16.msra.mxu0 %v322
    %352 = vmatpush.bf16.msra.mxu0 %v321
    %353 = vmatpush.bf16.msra.mxu0 %v320
    %354 = vmatpush.bf16.msra.mxu0 %v319
    %355 = vmatpush.bf16.msra.mxu0 %v318
    %356 = vmatpush.bf16.msra.mxu0 %v317
    %357 = vmatmul.bf16.gmra.mxu0 %v213
    %v358 = vpop.f32.mrf.mxu0
    %v359 = vadd.f32 %v251, %v358
    %v360 = vpop.f32.mrf.mxu0
    %v361 = vadd.f32 %v251, %v360
    %362 = vmatmul.bf16.gmra.mxu0 %v215
    %v363 = vpop.f32.mrf.mxu0
    %v364 = vadd.f32 %v251, %v363
    %v365 = vpop.f32.mrf.mxu0
    %v366 = vadd.f32 %v251, %v365
    %367 = vdwg.mxu0
    %368 = vmatpush.bf16.msra.mxu0 %v332
    %369 = vmatpush.bf16.msra.mxu0 %v331
    %370 = vmatpush.bf16.msra.mxu0 %v330
    %371 = vmatpush.bf16.msra.mxu0 %v329
    %372 = vmatpush.bf16.msra.mxu0 %v328
    %373 = vmatpush.bf16.msra.mxu0 %v327
    %374 = vmatpush.bf16.msra.mxu0 %v326
    %375 = vmatpush.bf16.msra.mxu0 %v325
    %376 = vmatmul.bf16.gmra.mxu0 %v214
    %v377 = vpop.f32.mrf.mxu0
    %v378 = vadd.f32 %v359, %v377
    %v379 = vpop.f32.mrf.mxu0
    %v380 = vadd.f32 %v361, %v379
    %381 = vmatmul.bf16.gmra.mxu0 %v216
    %v382 = vpop.f32.mrf.mxu0
    %v383 = vadd.f32 %v364, %v382
    %v384 = vpop.f32.mrf.mxu0
    %v385 = vadd.f32 %v366, %v384
    %386 = vdwg.mxu0
    %v387 = vmax.f32 %v378, 0.0
    %v388 = vmax.f32 %v380, 0.0
    %v389 = vmax.f32 %v383, 0.0
    %v390 = vmax.f32 %v385, 0.0
    %v391 = vpack.c.bf16 %v388, %v387
    %v392 = vpack.c.bf16 %v390, %v389
    %v393 = vld [vmem:[%s5] sm:$0xf]
    %v394 = vld [vmem:[%s5 + $0x4] sm:$0xf]
    %v395 = vld [vmem:[%s5 + $0x8] sm:$0xf]
    %v396 = vld [vmem:[%s5 + $0xc] sm:$0xf]
    %v397 = vld [vmem:[%s5 + $0x10] sm:$0xf]
    %v398 = vld [vmem:[%s5 + $0x14] sm:$0xf]
    %v399 = vld [vmem:[%s5 + $0x18] sm:$0xf]
    %v400 = vld [vmem:[%s5 + $0x1c] sm:$0xf]
    %v401 = vld [vmem:[%s5 + $0x20] sm:$0xf]
    %v402 = vld [vmem:[%s5 + $0x24] sm:$0xf]
    %v403 = vld [vmem:[%s5 + $0x28] sm:$0xf]
    %v404 = vld [vmem:[%s5 + $0x2c] sm:$0xf]
    %v405 = vld [vmem:[%s5 + $0x30] sm:$0xf]
    %v406 = vld [vmem:[%s5 + $0x34] sm:$0xf]
    %v407 = vld [vmem:[%s5 + $0x38] sm:$0xf]
    %v408 = vld [vmem:[%s5 + $0x3c] sm:$0xf]
    %s409 = sld [smem:[#allocation2]]
    %v410 = vstv %s409
    %v427 = vunpack.c.l.b16 %v393
    %v428 = vunpack.c.l.b16 %v394
    %v429 = vunpack.c.l.b16 %v395
    %v430 = vunpack.c.l.b16 %v396
    %v431 = vunpack.c.l.b16 %v397
    %v432 = vunpack.c.l.b16 %v398
    %v433 = vunpack.c.l.b16 %v399
    %v434 = vunpack.c.l.b16 %v400
    %v435 = vunpack.c.l.b16 %v401
    %v436 = vunpack.c.l.b16 %v402
    %v437 = vunpack.c.l.b16 %v403
    %v438 = vunpack.c.l.b16 %v404
    %v439 = vunpack.c.l.b16 %v405
    %v440 = vunpack.c.l.b16 %v406
    %v441 = vunpack.c.l.b16 %v407
    %v442 = vunpack.c.l.b16 %v408
    %v443 = vpack.c.b16 %v428, %v427
    %v444 = vpack.c.b16 %v430, %v429
    %v445 = vpack.c.b16 %v432, %v431
    %v446 = vpack.c.b16 %v434, %v433
    %v447 = vpack.c.b16 %v436, %v435
    %v448 = vpack.c.b16 %v438, %v437
    %v449 = vpack.c.b16 %v440, %v439
    %v450 = vpack.c.b16 %v442, %v441
    %459 = vmatpush.bf16.msra.mxu0 %v450
    %460 = vmatpush.bf16.msra.mxu0 %v449
    %461 = vmatpush.bf16.msra.mxu0 %v448
    %462 = vmatpush.bf16.msra.mxu0 %v447
    %463 = vmatpush.bf16.msra.mxu0 %v446
    %464 = vmatpush.bf16.msra.mxu0 %v445
    %465 = vmatpush.bf16.msra.mxu0 %v444
    %466 = vmatpush.bf16.msra.mxu0 %v443
    %467 = vmatmul.bf16.gmra.mxu0 %v391
    %v468 = vpop.f32.mrf.mxu0
    %v469 = vadd.f32 %v410, %v468
    %v470 = vpop.f32.mrf.mxu0
    %v471 = vadd.f32 %v410, %v470
    %472 = vmatmul.bf16.gmra.mxu0 %v392
    %v473 = vpop.f32.mrf.mxu0
    %v474 = vadd.f32 %v410, %v473
    %v475 = vpop.f32.mrf.mxu0
    %v476 = vadd.f32 %v410, %v475
    %477 = vdwg.mxu0
    %vm478 = vcmask 31744
    %479 = vst.msk [vmem:[%s7] sm:$0xff] %vm478, %v469
    %480 = vst.msk [vmem:[%s7 + $0x8] sm:$0xff] %vm478, %v471
    %481 = vst.msk [vmem:[%s7 + $0x10] sm:$0xff] %vm478, %v474
    %482 = vst.msk [vmem:[%s7 + $0x18] sm:$0xff] %vm478, %v476
    // Predicated region
    $region38: #{tpu_custom_call.1} parent=1 // pred_check
      _
    $region39: #{tpu_custom_call.1} parent=1 // pred_check_branch
      %484 = sbr.rel (0) target = $region41
    $region40: #{tpu_custom_call.1} parent=1 // pred_region
      _
    $region41: #{tpu_custom_call.1} parent=1 // pred_fallthru
      _
    // Predicated region
    $region42: #{tpu_custom_call.1} parent=1 // pred_check
      _
    $region43: #{tpu_custom_call.1} parent=1 // pred_check_branch
      %486 = sbr.rel (0) target = $region45
    $region44: #{tpu_custom_call.1} parent=1 // pred_region
      _
    $region45: #{tpu_custom_call.1} parent=1 // pred_fallthru
      _
    %487 = vsyncpa [#allocation4], 1
    %488 = vsyncpa [#allocation6], 1

</llo_original>
